<compile_context>
chip_gen: v7x
topology: tpu7x:2x2x1
jax: 0.10.0
libtpu: 0.0.40
codegen_flags: <defaults>
</compile_context>

<pallas_src>
from typing import List, Union

import numpy as np
import jax
import jax.numpy as jnp
from jax.experimental import pallas as pl
from jax.experimental.pallas import tpu as pltpu


def _round_up(x: int, m: int) -> int:
    return ((x + m - 1) // m) * m


def _pick_tile(dim_pad: int, unit: int, cap: int) -> int:
    """Largest multiple of `unit` that divides `dim_pad` and is <= cap."""
    n = dim_pad // unit
    max_mult = max(1, cap // unit)
    best = 1
    for d in range(1, min(n, max_mult) + 1):
        if n % d == 0:
            best = d
    return best * unit


def _missing_net_kernel(x_ref, w_ref, b_ref, o_ref):
    """One (tm, tn) output tile, accumulated over the F (reduction) grid axis.

    x_ref: (tm, tk)  bf16 activations
    w_ref: (tk, tn)  bf16 pre-masked, pre-transposed weight
    b_ref: (1,  tn)  f32 bias
    o_ref: (tm, tn)  f32 output (resident across k -> used as the accumulator)
    """
    k = pl.program_id(2)

    @pl.when(k == 0)
    def _():
        o_ref[...] = jnp.zeros_like(o_ref)

    o_ref[...] += jnp.dot(
        x_ref[...], w_ref[...], preferred_element_type=jnp.float32
    )

    @pl.when(k == pl.num_programs(2) - 1)
    def _():
        o_ref[...] = jnp.maximum(o_ref[...] + b_ref[...], 0.0)


def prepare_missing_net(weight, mask, bias, *, compute_dtype=jnp.bfloat16):
    """One-time (per model) preparation of kernel operands.

    Folds the static binary mask into the weight, compacts away fully-masked
    input columns, transposes to (F, H), pads to lane-dense 128-multiples and
    casts to the compute dtype.  Assumes weight/mask/bias are static per model
    (as in the PyTorch module, where the mask never changes after __init__).
    """
    H, F = weight.shape
    mask_np = np.asarray(mask, dtype=np.float32)
    w_masked = np.asarray(weight, dtype=np.float32) * mask_np
    b_np = np.asarray(bias, dtype=np.float32)

    kept = np.nonzero(mask_np.any(axis=0))[0].astype(np.int32)
    compact = (0 < kept.size < F)
    if compact:
        w_used = w_masked[:, kept]          # (H, Fk)
        kept_idx = jnp.asarray(kept)
    else:
        w_used = w_masked                   # (H, F)
        kept_idx = None
    Fk = w_used.shape[1]

    F_pad = _round_up(max(Fk, 1), 128)
    H_pad = _round_up(H, 128)

    w_p = np.zeros((F_pad, H_pad), np.float32)
    w_p[:Fk, :H] = w_used.T
    b_p = np.zeros((1, H_pad), np.float32)
    b_p[0, :H] = b_np

    return {
        "w_p": jnp.asarray(w_p).astype(compute_dtype),
        "b_p": jnp.asarray(b_p),
        "kept_idx": kept_idx,
        "H": H,
        "F": F,
        "Fk": Fk,
        "compute_dtype": compute_dtype,
    }


def missing_net_forward(x, params):
    """relu(x @ (W*mask)^T + b) for x:[..., F] using prepared params -> [..., H]."""
    compute_dtype = params["compute_dtype"]
    H, F, Fk = params["H"], params["F"], params["Fk"]
    w_p, b_p = params["w_p"], params["b_p"]
    F_pad, H_pad = w_p.shape

    orig_shape = x.shape
    assert orig_shape[-1] == F
    if x.ndim != 2:
        x = x.reshape(-1, F)
    B = x.shape[0]

    # Static gather of the kept feature dims (mask compaction).
    if params["kept_idx"] is not None:
        x = jnp.take(x, params["kept_idx"], axis=1)

    # Pad B to a sublane-packed multiple (16 for bf16) and F to the prepared
    # 128-multiple; cast activations once.
    B_pad = _round_up(B, 16)
    x_p = jnp.pad(x, ((0, B_pad - B), (0, F_pad - Fk))).astype(compute_dtype)

    # Tile sizes: exact divisors of the padded dims (no tile-cap padding).
    tm = _pick_tile(B_pad, 16, 256)
    tn = _pick_tile(H_pad, 128, 1024)
    tk = _pick_tile(F_pad, 128, 1024)
    grid_i, grid_j, grid_k = B_pad // tm, H_pad // tn, F_pad // tk

    # v7x has 2 TensorCores: if both parallel axes collapsed to one program,
    # split whichever axis re-streams fewer extra bytes.
    itemsize = jnp.dtype(compute_dtype).itemsize
    w_bytes = F_pad * H_pad * itemsize
    x_bytes = B_pad * F_pad * itemsize
    if grid_i == 1 and grid_j == 1:
        candidates = []
        if tm >= 32:
            tm2 = _pick_tile(B_pad, 16, tm // 2)
            if B_pad // tm2 >= 2:
                candidates.append(((B_pad // tm2 - 1) * w_bytes, "i", tm2))
        if tn >= 256:
            tn2 = _pick_tile(H_pad, 128, tn // 2)
            if H_pad // tn2 >= 2:
                candidates.append(((H_pad // tn2 - 1) * x_bytes, "j", tn2))
        if candidates:
            candidates.sort(key=lambda c: c[0])
            _, axis, tile = candidates[0]
            if axis == "i":
                tm = tile
            else:
                tn = tile
            grid_i, grid_j = B_pad // tm, H_pad // tn

    grid = (grid_i, grid_j, grid_k)

    out_padded = pl.pallas_call(
        _missing_net_kernel,
        out_shape=jax.ShapeDtypeStruct((B_pad, H_pad), jnp.float32),
        grid_spec=pltpu.PrefetchScalarGridSpec(
            num_scalar_prefetch=0,
            grid=grid,
            in_specs=[
                pl.BlockSpec((tm, tk), lambda i, j, k: (i, k)),   # x (bf16)
                pl.BlockSpec((tk, tn), lambda i, j, k: (k, j)),   # masked W^T (bf16)
                pl.BlockSpec((1, tn), lambda i, j, k: (0, j)),    # bias (f32)
            ],
            out_specs=pl.BlockSpec((tm, tn), lambda i, j, k: (i, j)),
        ),
        compiler_params=pltpu.CompilerParams(
            dimension_semantics=("parallel", "parallel", "arbitrary"),
        ),
        cost_estimate=pl.CostEstimate(
            flops=2 * B_pad * H_pad * F_pad,
            transcendentals=0,
            bytes_accessed=(grid_j * x_bytes + grid_i * w_bytes
                            + H_pad * 4 + B_pad * H_pad * 4),
        ),
    )(x_p, w_p, b_p)

    out = out_padded[:B, :H]
    if len(orig_shape) != 2:
        out = out.reshape(*orig_shape[:-1], H)
    return out


def make_missing_net_params(
    key,
    y_numel: int,
    hidden_features: int,
    dims: Union[str, List[int]] = "all",
    force_diagonal: bool = False,
):
    """Deterministic parameter construction mirroring MissingNet.__init__.

    nn.Linear default init: U(-1/sqrt(fan_in), 1/sqrt(fan_in)) for weight & bias.
    The mask keeps only columns in `dims`; optionally diagonalized; the stored
    weight is pre-multiplied by the mask (as __init__ does).
    """
    kw, kb = jax.random.split(key)
    bound = 1.0 / jnp.sqrt(jnp.asarray(y_numel, jnp.float32))
    weight = jax.random.uniform(
        kw, (hidden_features, y_numel), jnp.float32, -bound, bound
    )
    bias = jax.random.uniform(kb, (hidden_features,), jnp.float32, -bound, bound)

    # dropout_except4dims
    mask = jnp.zeros((hidden_features, y_numel), jnp.float32)
    if dims == "all":
        dims = list(range(y_numel))
    mask = mask.at[:, jnp.asarray(dims, jnp.int32)].set(1.0)

    # enforce_diagonality
    if force_diagonal:
        assert hidden_features == y_numel, (
            "diagonality can only be enforced if hidden == input features"
        )
        mask = mask * jnp.eye(hidden_features, dtype=jnp.float32)

    weight = weight * mask
    return weight, mask, bias


def _quantized_reference(x, weight, mask, bias, dtype):
    """Reference with the same bf16 input quantization / f32 accumulation."""
    x_q = x.astype(dtype).astype(jnp.float32)
    w_q = (weight * mask).astype(dtype).astype(jnp.float32)
    return jnp.maximum(x_q @ w_q.T + bias, 0.0)


if __name__ == "__main__":
    key = jax.random.PRNGKey(0)
    k_x, k_p, k_x2, k_p2 = jax.random.split(key, 4)

    # --- small shapes matching the module's intended use -------------------
    B, F, H = 8, 16, 32
    dims = [0, 1, 2, 3, 5, 7, 11, 13]   # keep only a subset of feature dims

    weight, mask, bias = make_missing_net_params(
        k_p, y_numel=F, hidden_features=H, dims=dims, force_diagonal=False
    )
    params = prepare_missing_net(weight, mask, bias)   # one-time prep
    x = jax.random.normal(k_x, (B, F), jnp.float32)

    out = jax.block_until_ready(missing_net_forward(x, params))
    assert out.shape == (B, H)

    ref_q = _quantized_reference(x, weight, mask, bias, jnp.bfloat16)
    assert jnp.allclose(out, ref_q, atol=1e-3, rtol=1e-3)
    ref_f32 = jnp.maximum(x @ (weight * mask).T + bias, 0.0)
    assert jnp.allclose(out, ref_f32, atol=2e-2, rtol=2e-2)

    # --- larger check: multi-program grid + k-axis accumulation ------------
    B2, F2, H2 = 64, 1536, 384
    weight2, mask2, bias2 = make_missing_net_params(
        k_p2, y_numel=F2, hidden_features=H2, dims="all", force_diagonal=False
    )
    params2 = prepare_missing_net(weight2, mask2, bias2)
    x2 = jax.random.normal(k_x2, (B2, F2), jnp.float32)

    out2 = jax.block_until_ready(missing_net_forward(x2, params2))
    assert out2.shape == (B2, H2)

    ref2_q = _quantized_reference(x2, weight2, mask2, bias2, jnp.bfloat16)
    assert jnp.allclose(out2, ref2_q, atol=1e-3, rtol=1e-3)

    print("KERNEL_OK")
</pallas_src>

<mosaic_0001>
module attributes {stable_mosaic.version = 11 : i64} {
  func.func @_missing_net_kernel(%arg0: i32, %arg1: i32, %arg2: i32, %arg3: memref<16x128xbf16, #tpu.memory_space<vmem>>, %arg4: memref<128x128xbf16, #tpu.memory_space<vmem>>, %arg5: memref<1x128xf32, #tpu.memory_space<vmem>>, %arg6: memref<16x128xf32, #tpu.memory_space<vmem>>) attributes {dimension_semantics = [#tpu.dimension_semantics<parallel>, #tpu.dimension_semantics<parallel>, #tpu.dimension_semantics<arbitrary>], iteration_bounds = array<i64: 1, 1, 1>, scalar_prefetch = 0 : i64, scratch_operands = 0 : i64, tpu.core_type = #tpu.core_type<tc>, window_params = [{transform_indices = @transform_0, window_bounds = array<i64: 16, 128>}, {transform_indices = @transform_1, window_bounds = array<i64: 128, 128>}, {transform_indices = @transform_2, window_bounds = array<i64: 1, 128>}, {transform_indices = @transform_3, window_bounds = array<i64: 16, 128>}]} {
    %c0_i32 = arith.constant 0 : i32
    %0 = arith.cmpi eq, %arg2, %c0_i32 : i32
    %1 = arith.extui %0 : i1 to i32
    %c0_i32_0 = arith.constant 0 : i32
    %2 = arith.cmpi ne, %1, %c0_i32_0 : i32
    scf.if %2 {
      %cst_10 = arith.constant 0.000000e+00 : f32
      %12 = vector.broadcast %cst_10 : f32 to vector<16x128xf32>
      %c0_11 = arith.constant 0 : index
      %c0_12 = arith.constant 0 : index
      %13 = vector.load %arg6[%c0_11, %c0_12] : memref<16x128xf32, #tpu.memory_space<vmem>>, vector<16x128xf32>
      tpu.vector_store %arg6[%c0_11, %c0_12], %12 {strides = array<i32>} : memref<16x128xf32, #tpu.memory_space<vmem>>, vector<16x128xf32>,
    } else {
    }
    %c0 = arith.constant 0 : index
    %c0_1 = arith.constant 0 : index
    %3 = vector.load %arg6[%c0, %c0_1] : memref<16x128xf32, #tpu.memory_space<vmem>>, vector<16x128xf32>
    %c0_2 = arith.constant 0 : index
    %c0_3 = arith.constant 0 : index
    %4 = vector.load %arg3[%c0_2, %c0_3] : memref<16x128xbf16, #tpu.memory_space<vmem>>, vector<16x128xbf16>
    %c0_4 = arith.constant 0 : index
    %c0_5 = arith.constant 0 : index
    %5 = vector.load %arg4[%c0_4, %c0_5] : memref<128x128xbf16, #tpu.memory_space<vmem>>, vector<128x128xbf16>
    %cst = arith.constant dense<0.000000e+00> : vector<16x128xf32>
    %6 = tpu.matmul %4, %5, %cst {dimension_numbers = #tpu.dot_dimension_numbers<[1], [0], [0], [1], [0, 0, 1, 1], [], []>} : vector<16x128xbf16>, vector<128x128xbf16>, vector<16x128xf32> -> vector<16x128xf32>
    %7 = arith.addf %3, %6 : vector<16x128xf32>
    %c0_6 = arith.constant 0 : index
    %c0_7 = arith.constant 0 : index
    %8 = vector.load %arg6[%c0_6, %c0_7] : memref<16x128xf32, #tpu.memory_space<vmem>>, vector<16x128xf32>
    tpu.vector_store %arg6[%c0_6, %c0_7], %7 {strides = array<i32>} : memref<16x128xf32, #tpu.memory_space<vmem>>, vector<16x128xf32>,
    %c0_i32_8 = arith.constant 0 : i32
    %9 = arith.cmpi eq, %arg2, %c0_i32_8 : i32
    %10 = arith.extui %9 : i1 to i32
    %c0_i32_9 = arith.constant 0 : i32
    %11 = arith.cmpi ne, %10, %c0_i32_9 : i32
    scf.if %11 {
      %c0_10 = arith.constant 0 : index
      %c0_11 = arith.constant 0 : index
      %12 = vector.load %arg6[%c0_10, %c0_11] : memref<16x128xf32, #tpu.memory_space<vmem>>, vector<16x128xf32>
      %c0_12 = arith.constant 0 : index
      %c0_13 = arith.constant 0 : index
      %13 = vector.load %arg5[%c0_12, %c0_13] : memref<1x128xf32, #tpu.memory_space<vmem>>, vector<1x128xf32>
      %14 = vector.broadcast %13 : vector<1x128xf32> to vector<16x128xf32>
      %15 = arith.addf %12, %14 : vector<16x128xf32>
      %cst_14 = arith.constant 0.000000e+00 : f32
      %16 = vector.broadcast %cst_14 : f32 to vector<16x128xf32>
      %17 = arith.maximumf %15, %16 : vector<16x128xf32>
      %c0_15 = arith.constant 0 : index
      %c0_16 = arith.constant 0 : index
      %18 = vector.load %arg6[%c0_15, %c0_16] : memref<16x128xf32, #tpu.memory_space<vmem>>, vector<16x128xf32>
      tpu.vector_store %arg6[%c0_15, %c0_16], %17 {strides = array<i32>} : memref<16x128xf32, #tpu.memory_space<vmem>>, vector<16x128xf32>,
    } else {
    }
    return
  }
  func.func @transform_0(%arg0: i32, %arg1: i32, %arg2: i32) -> (i32, i32) {
    %c0_i32 = arith.constant 0 : i32
    return %arg0, %arg2 : i32, i32
  }
  func.func @transform_1(%arg0: i32, %arg1: i32, %arg2: i32) -> (i32, i32) {
    %c0_i32 = arith.constant 0 : i32
    return %arg2, %arg1 : i32, i32
  }
  func.func @transform_2(%arg0: i32, %arg1: i32, %arg2: i32) -> (i32, i32) {
    %c0_i32 = arith.constant 0 : i32
    %c0_i32_0 = arith.constant 0 : i32
    return %c0_i32, %arg1 : i32, i32
  }
  func.func @transform_3(%arg0: i32, %arg1: i32, %arg2: i32) -> (i32, i32) {
    %c0_i32 = arith.constant 0 : i32
    return %arg0, %arg1 : i32, i32
  }
}

</mosaic_0001>

<llo_original>
// kernel: tpu_custom_call.1
$region0: #{tpu_custom_call.1}
  #allocation0 [shape = 'u32[]', space=smem, size = 0x4, offset = 0x4, fixed_abs, tag = 'smem constant byte address 0x4 - core index']
  #allocation1 [shape = 'u32[144,128]{1,0:T(1,128)}', space=vmem, size = 0x12000, scoped, tag = 'internal scratch']
  %s0 = inlined_call_operand.hbm [shape: bf16[16,128], index: 0, kind: input, shape index: {}]
  %s1 = inlined_call_operand.hbm [shape: bf16[128,128], index: 1, kind: input, shape index: {}]
  %s2 = inlined_call_operand.vmem [shape: f32[1,128], index: 2, kind: input, shape index: {}]
  %s3 = inlined_call_operand.hbm [shape: f32[16,128], index: 3, kind: output, shape index: {}]
  %s4 = sld [smem:[#allocation0]]
  $region38: #{tpu_custom_call.1} parent=0
    _
  %s6 = ssub.s32 1, %s4
  %s7 = scalar_select 0, %s6, %s4
  $region1: #{tpu_custom_call.1} parent=0
    #allocation2 [shape = 'u8[4096]{0}', space=vmem, size = 0x1000, scoped, tag = 'input window, operand 0, single buffered']
    #allocation3 [shape = 's32[1]{0}', space=sflag, size = 0x4, scoped, tag = 'scoped memory for tpu_custom_call.1']
    #allocation4 [shape = 's32[1]{0}', space=sflag, size = 0x4, scoped, tag = 'scoped memory for tpu_custom_call.1']
    #allocation5 [shape = 'u8[32768]{0}', space=vmem, size = 0x8000, scoped, tag = 'input window, operand 1, single buffered']
    #allocation6 [shape = 's32[1]{0}', space=sflag, size = 0x4, scoped, tag = 'scoped memory for tpu_custom_call.1']
    #allocation7 [shape = 'u8[8192]{0}', space=vmem, size = 0x2000, scoped, tag = 'output window, operand 0, single buffered']
    %8 = vsyncpa [#allocation3], 0
    %9 = vsyncpa [#allocation6], 0
    %10 = vsyncpa [#allocation4], 0
    // Predicated region
    $region2: #{tpu_custom_call.1} parent=1 // pred_check
      _
    $region3: #{tpu_custom_call.1} parent=1 // pred_check_branch
      %12 = sbr.rel (0) target = $region5
    $region4: #{tpu_custom_call.1} parent=1 // pred_region
      %s14 = ssub.s32 128, 128
      %15 = vsyncadd [#allocation3], %s14
      %s16 = sshll.u32 [#allocation2], 4
      %s17 = int_to_ptr.vmem [resolvable:$true] %s16
      %22 = dma.hbm_to_vmem [thread:$0]  %s0, 128, %s17, [#allocation3], 64, 64, 4
    $region5: #{tpu_custom_call.1} parent=1 // pred_fallthru
      _
    // Predicated region
    $region6: #{tpu_custom_call.1} parent=1 // pred_check
      _
    $region7: #{tpu_custom_call.1} parent=1 // pred_check_branch
      %24 = sbr.rel (0) target = $region9
    $region8: #{tpu_custom_call.1} parent=1 // pred_region
      %s26 = ssub.s32 1024, 1024
      %27 = vsyncadd [#allocation6], %s26
      %s28 = sshll.u32 [#allocation5], 4
      %s29 = int_to_ptr.vmem [resolvable:$true] %s28
      %34 = dma.hbm_to_vmem [thread:$0]  %s1, 1024, %s29, [#allocation6], 64, 64, 4
    $region9: #{tpu_custom_call.1} parent=1 // pred_fallthru
      _
    // Predicated region
    $region10: #{tpu_custom_call.1} parent=1 // pred_check
      _
    $region11: #{tpu_custom_call.1} parent=1 // pred_check_branch
      %36 = sbr.rel (0) target = $region13
    $region12: #{tpu_custom_call.1} parent=1 // pred_region
      _
    $region13: #{tpu_custom_call.1} parent=1 // pred_fallthru
      _
    // Predicated region
    $region14: #{tpu_custom_call.1} parent=1 // pred_check
      _
    $region15: #{tpu_custom_call.1} parent=1 // pred_check_branch
      %38 = sbr.rel (0) target = $region17
    $region16: #{tpu_custom_call.1} parent=1 // pred_region
      %39 = dma.done [#allocation3], 128
    $region17: #{tpu_custom_call.1} parent=1 // pred_fallthru
      _
    // Predicated region
    $region18: #{tpu_custom_call.1} parent=1 // pred_check
      _
    $region19: #{tpu_custom_call.1} parent=1 // pred_check_branch
      %41 = sbr.rel (0) target = $region21
    $region20: #{tpu_custom_call.1} parent=1 // pred_region
      %42 = dma.done [#allocation6], 1024
    $region21: #{tpu_custom_call.1} parent=1 // pred_fallthru
      _
    %p44 = scmp.eq.s32.totalorder 0, 0
    // Predicated region
    $region22: #{tpu_custom_call.1} parent=1 // pred_check
      %p45 = pneg %p44
    $region23: #{tpu_custom_call.1} parent=1 // pred_check_branch
      %47 = sbr.rel (%p45) target = $region25
    $region24: #{tpu_custom_call.1} parent=1 // pred_region
      %48 = vst [vmem:[#allocation7] sm:$0xff] 0.0
      %49 = vst [vmem:[#allocation7 + $0x8] sm:$0xff] 0.0
    $region25: #{tpu_custom_call.1} parent=1 // pred_fallthru
      _
    %v50 = vld [vmem:[#allocation7] sm:$0xff]
    %v51 = vld [vmem:[#allocation7 + $0x8] sm:$0xff]
    %v52 = vld [vmem:[#allocation2] sm:$0xf]
    %v53 = vld [vmem:[#allocation2 + $0x4] sm:$0xf]
    %v54 = vld [vmem:[#allocation5] sm:$0xf]
    %v55 = vld [vmem:[#allocation5 + $0x4] sm:$0xf]
    %v56 = vld [vmem:[#allocation5 + $0x8] sm:$0xf]
    %v57 = vld [vmem:[#allocation5 + $0xc] sm:$0xf]
    %v58 = vld [vmem:[#allocation5 + $0x10] sm:$0xf]
    %v59 = vld [vmem:[#allocation5 + $0x14] sm:$0xf]
    %v60 = vld [vmem:[#allocation5 + $0x18] sm:$0xf]
    %v61 = vld [vmem:[#allocation5 + $0x1c] sm:$0xf]
    %v62 = vld [vmem:[#allocation5 + $0x20] sm:$0xf]
    %v63 = vld [vmem:[#allocation5 + $0x24] sm:$0xf]
    %v64 = vld [vmem:[#allocation5 + $0x28] sm:$0xf]
    %v65 = vld [vmem:[#allocation5 + $0x2c] sm:$0xf]
    %v66 = vld [vmem:[#allocation5 + $0x30] sm:$0xf]
    %v67 = vld [vmem:[#allocation5 + $0x34] sm:$0xf]
    %v68 = vld [vmem:[#allocation5 + $0x38] sm:$0xf]
    %v69 = vld [vmem:[#allocation5 + $0x3c] sm:$0xf]
    %v72 = vunpack.c.l.b16 %v52
    %v73 = vunpack.c.l.b16 %v53
    %v74 = vpack.c.b16 %v73, %v72
    %v92 = vunpack.c.l.b16 %v54
    %v93 = vunpack.c.l.b16 %v55
    %v94 = vunpack.c.l.b16 %v56
    %v95 = vunpack.c.l.b16 %v57
    %v96 = vunpack.c.l.b16 %v58
    %v97 = vunpack.c.l.b16 %v59
    %v98 = vunpack.c.l.b16 %v60
    %v99 = vunpack.c.l.b16 %v61
    %v100 = vunpack.c.l.b16 %v62
    %v101 = vunpack.c.l.b16 %v63
    %v102 = vunpack.c.l.b16 %v64
    %v103 = vunpack.c.l.b16 %v65
    %v104 = vunpack.c.l.b16 %v66
    %v105 = vunpack.c.l.b16 %v67
    %v106 = vunpack.c.l.b16 %v68
    %v107 = vunpack.c.l.b16 %v69
    %v108 = vpack.c.b16 %v93, %v92
    %v109 = vpack.c.b16 %v95, %v94
    %v110 = vpack.c.b16 %v97, %v96
    %v111 = vpack.c.b16 %v99, %v98
    %v112 = vpack.c.b16 %v101, %v100
    %v113 = vpack.c.b16 %v103, %v102
    %v114 = vpack.c.b16 %v105, %v104
    %v115 = vpack.c.b16 %v107, %v106
    %124 = vmatprep.subr.bf16.mxu0 0
    %125 = vmatpush1.bf16.msra.mxu0 %v108
    %126 = vmatprep.subr.bf16.mxu0 0
    %127 = vmatpush1.bf16.msra.mxu0 %v109
    %128 = vmatprep.subr.bf16.mxu0 0
    %129 = vmatpush1.bf16.msra.mxu0 %v110
    %130 = vmatprep.subr.bf16.mxu0 0
    %131 = vmatpush1.bf16.msra.mxu0 %v111
    %132 = vmatprep.subr.bf16.mxu0 0
    %133 = vmatpush1.bf16.msra.mxu0 %v112
    %134 = vmatprep.subr.bf16.mxu0 0
    %135 = vmatpush1.bf16.msra.mxu0 %v113
    %136 = vmatprep.subr.bf16.mxu0 0
    %137 = vmatpush1.bf16.msra.mxu0 %v114
    %138 = vmatprep.subr.bf16.mxu0 0
    %139 = vmatpush1.bf16.msra.mxu0 %v115
    %140 = vmatprep.subr.bf16.mxu0 0
    %141 = vmatpush1.bf16.msra.mxu0 0
    %142 = vmatprep.subr.bf16.mxu0 0
    %143 = vmatpush1.bf16.msra.mxu0 0
    %144 = vmatprep.subr.bf16.mxu0 0
    %145 = vmatpush1.bf16.msra.mxu0 0
    %146 = vmatprep.subr.bf16.mxu0 0
    %147 = vmatpush1.bf16.msra.mxu0 0
    %148 = vmatprep.subr.bf16.mxu0 0
    %149 = vmatpush1.bf16.msra.mxu0 0
    %150 = vmatprep.subr.bf16.mxu0 0
    %151 = vmatpush1.bf16.msra.mxu0 0
    %152 = vmatprep.subr.bf16.mxu0 0
    %153 = vmatpush1.bf16.msra.mxu0 0
    %154 = vmatprep.subr.bf16.mxu0 0
    %155 = vmatpush1.bf16.msra.mxu0 0
    %156 = vmatprep.mubr.bf16.mxu0 0
    %157 = vmatmul.mubr.bf16.gmra.mrb[0].mxu0 %v74
    %v158 = vpop.f32.mrb[0].mxu0
    %v159 = vadd.f32 0.0, %v158
    %v160 = vpop.f32.mrb[0].mxu0
    %v161 = vpop.f32.mrb[0].mxu0
    %v162 = vadd.f32 0.0, %v161
    %v163 = vpop.f32.mrb[0].mxu0
    %164 = vdwg.mxu0
    %v165 = vadd.f32 %v50, %v159
    %v166 = vadd.f32 %v51, %v162
    %167 = vst [vmem:[#allocation7] sm:$0xff] %v165
    %168 = vst [vmem:[#allocation7 + $0x8] sm:$0xff] %v166
    // Predicated region
    $region26: #{tpu_custom_call.1} parent=1 // pred_check
      %p169 = pneg %p44
    $region27: #{tpu_custom_call.1} parent=1 // pred_check_branch
      %171 = sbr.rel (%p169) target = $region29
    $region28: #{tpu_custom_call.1} parent=1 // pred_region
      %v172 = vld [vmem:[#allocation7] sm:$0xff]
      %v173 = vld [vmem:[#allocation7 + $0x8] sm:$0xff]
      %v174 = vld [vmem:[%s2] sm:$0x1]
      %v176 = vlaneseq
      %v177 = vshrl.u32 %v176, 7
      %v178 = vsub.s32 0, %v177
      %v179 = vrot.slane %v174, %v178
      %v181 = vadd.f32 %v172, %v179
      %v182 = vadd.f32 %v173, %v179
      %v183 = vmax.f32 %v181, 0.0
      %v184 = vmax.f32 %v182, 0.0
      %185 = vst [vmem:[#allocation7] sm:$0xff] %v183
      %186 = vst [vmem:[#allocation7 + $0x8] sm:$0xff] %v184
    $region29: #{tpu_custom_call.1} parent=1 // pred_fallthru
      _
    // Predicated region
    $region30: #{tpu_custom_call.1} parent=1 // pred_check
      _
    $region31: #{tpu_custom_call.1} parent=1 // pred_check_branch
      %188 = sbr.rel (0) target = $region33
    $region32: #{tpu_custom_call.1} parent=1 // pred_region
      %s190 = ssub.s32 256, 256
      %191 = vsyncadd [#allocation4], %s190
      %s192 = sshll.u32 [#allocation7], 4
      %s193 = int_to_ptr.vmem [resolvable:$true] %s192
      %198 = dma.vmem_to_hbm [thread:$0]  %s193, 256, %s3, [#allocation4], 128, 128, 8
    $region33: #{tpu_custom_call.1} parent=1 // pred_fallthru
      _
    // Predicated region
    $region34: #{tpu_custom_call.1} parent=1 // pred_check
      _
    $region35: #{tpu_custom_call.1} parent=1 // pred_check_branch
      %200 = sbr.rel (0) target = $region37
    $region36: #{tpu_custom_call.1} parent=1 // pred_region
      %201 = dma.done [#allocation4], 256
    $region37: #{tpu_custom_call.1} parent=1 // pred_fallthru
      _
    %202 = vsyncpa [#allocation3], 1
    %203 = vsyncpa [#allocation6], 1
    %204 = vsyncpa [#allocation4], 1

</llo_original>
